<compile_context>
chip_gen: v7x
topology: tpu7x:2x2x1
jax: 0.10.0
libtpu: 0.0.40
codegen_flags: <defaults>
</compile_context>

<pallas_src>
import jax
import jax.numpy as jnp
from jax.experimental import pallas as pl
from jax.experimental.pallas import tpu as pltpu

LANE = 128


def _round_up(a, b):
    return ((a + b - 1) // b) * b


def _make_kernel(compute_dtype):
    def kernel(alpha_ref, x_ref, o_ref):
        # alpha_ref: (1, 1) f32 scalar in SMEM; x_ref/o_ref: (tile_rows, 128) VMEM tiles.
        inv_alpha = (1.0 / alpha_ref[0, 0]).astype(compute_dtype)
        y = x_ref[...].astype(compute_dtype) * inv_alpha
        o_ref[...] = jnp.clip(y, -1.0, 1.0).astype(o_ref.dtype)

    return kernel


def _device_generation():
    try:
        kind = jax.devices()[0].device_kind.lower()
    except Exception:
        kind = ""
    if "v5" in kind:
        return 5
    if "v7" in kind:
        return 7
    return 6  # default: treat like v6e


def _line_tanh_impl(x, alpha):
    orig_shape = x.shape
    orig_dtype = x.dtype
    n = x.size

    itemsize = jnp.dtype(orig_dtype).itemsize
    # Minimum sublane multiple per dtype packing: (8,128) f32, (16,128) bf16/f16,
    # (32,128) for 8-bit types.
    sub = {4: 8, 2: 16, 1: 32}.get(itemsize, 8)

    gen = _device_generation()
    # Generation-aware input-tile byte target.
    tile_bytes_target = {5: 2 << 20, 6: 4 << 20, 7: 8 << 20}[gen]

    # Compute dtype: keep bf16/f16 native on v6e/v7x; upcast to f32 elsewhere.
    if itemsize == 2 and gen >= 6:
        compute_dtype = orig_dtype
    else:
        compute_dtype = jnp.float32

    # Flatten to a lane-dense (rows, 128) slab. Under jit these reshapes are
    # pure layout metadata for contiguous inputs.
    x_flat = jnp.ravel(x)
    n_pad = _round_up(n, LANE)
    if n_pad // LANE < sub:
        n_pad = sub * LANE  # guarantee an (8|16|32, 128)-alignable block exists
    if n_pad != n:
        # TODO(synk): for large unaligned inputs, run the kernel on the aligned
        # prefix and clamp the tiny (<128-elem) tail in plain XLA instead of padding.
        x_flat = jnp.pad(x_flat, (0, n_pad - n))
    rows = n_pad // LANE
    x2d = x_flat.reshape(rows, LANE)

    # Tile sizing: large lane-dense tiles; Pallas masks the partial last block,
    # so rows need not divide tile_rows.
    target_tile_rows = max(sub, tile_bytes_target // (LANE * itemsize))
    tile_rows = min(_round_up(rows, sub), _round_up(target_tile_rows, sub))
    # Prefer >= ~8 grid steps on large inputs so the two v7x TensorCores stay
    # balanced under dimension_semantics=("parallel",); harmless on v5e/v6e.
    min_steps = 8
    if rows > min_steps * sub:
        tile_rows = min(tile_rows, _round_up(pl.cdiv(rows, min_steps), sub))
    grid = (pl.cdiv(rows, tile_rows),)

    tile_bytes = tile_rows * LANE * itemsize
    # 2 buffers x (in + out) x tile + headroom; cap well under v7x's 64 MiB
    # physical VMEM while sitting above the 16 MiB v5e scoped default when needed.
    vmem_limit = int(min(48 << 20, 4 * tile_bytes + (16 << 20)))

    alpha_arr = jnp.asarray(alpha, dtype=jnp.float32).reshape(1, 1)

    out2d = pl.pallas_call(
        _make_kernel(compute_dtype),
        out_shape=jax.ShapeDtypeStruct((rows, LANE), orig_dtype),
        grid_spec=pltpu.PrefetchScalarGridSpec(
            num_scalar_prefetch=0,
            grid=grid,
            in_specs=[
                pl.BlockSpec(memory_space=pltpu.MemorySpace.SMEM),   # alpha (1,1)
                pl.BlockSpec((tile_rows, LANE), lambda i: (i, 0)),   # x tile
            ],
            out_specs=pl.BlockSpec((tile_rows, LANE), lambda i: (i, 0)),
        ),
        compiler_params=pltpu.CompilerParams(
            dimension_semantics=("parallel",),
            vmem_limit_bytes=vmem_limit,
        ),
    )(alpha_arr, x2d)

    out_flat = out2d.reshape(-1)
    if n_pad != n:
        out_flat = out_flat[:n]
    return out_flat.reshape(orig_shape)


# Jit the wrapper: the ravel/reshape (and any pad/slice) around the pallas_call
# become layout metadata / fused ops instead of separately dispatched HBM passes.
line_tanh = jax.jit(_line_tanh_impl)


if __name__ == "__main__":
    key = jax.random.PRNGKey(0)
    # NCHW input, small shape: batch=2, channels=4, spatial=16x16
    x = jax.random.normal(key, (2, 4, 16, 16), dtype=jnp.float32) * 3.0

    # Deterministic parameter init matching nn.Parameter(torch.tensor(1.0))
    alpha = jnp.float32(1.0)

    out = line_tanh(x, alpha)
    out = jax.block_until_ready(out)

    # Reference check in plain JAX
    ref = jnp.clip(x * (1.0 / alpha), -1.0, 1.0)
    assert out.shape == x.shape
    assert out.dtype == x.dtype
    assert jnp.allclose(out, ref, atol=1e-6), "mismatch vs reference"

    print("KERNEL_OK")
</pallas_src>

<mosaic_0001>
module attributes {stable_mosaic.version = 11 : i64} {
  func.func @kernel(%arg0: i32, %arg1: memref<1x1xf32, #tpu.memory_space<smem>>, %arg2: memref<16x128xf32, #tpu.memory_space<vmem>>, %arg3: memref<16x128xf32, #tpu.memory_space<vmem>>) attributes {dimension_semantics = [#tpu.dimension_semantics<parallel>], iteration_bounds = array<i64: 1>, scalar_prefetch = 0 : i64, scratch_operands = 0 : i64, tpu.core_type = #tpu.core_type<tc>, window_params = [{transform_indices = @transform_0, window_bounds = array<i64: 1, 1>}, {transform_indices = @transform_1, window_bounds = array<i64: 16, 128>}, {transform_indices = @transform_2, window_bounds = array<i64: 16, 128>}]} {
    %c0 = arith.constant 0 : index
    %c0_0 = arith.constant 0 : index
    %0 = memref.load %arg1[%c0, %c0_0] : memref<1x1xf32, #tpu.memory_space<smem>>
    %cst = arith.constant 1.000000e+00 : f32
    %1 = arith.divf %cst, %0 : f32
    %c0_1 = arith.constant 0 : index
    %c0_2 = arith.constant 0 : index
    %2 = vector.load %arg2[%c0_1, %c0_2] : memref<16x128xf32, #tpu.memory_space<vmem>>, vector<16x128xf32>
    %3 = vector.broadcast %1 : f32 to vector<16x128xf32>
    %4 = arith.mulf %2, %3 : vector<16x128xf32>
    %cst_3 = arith.constant -1.000000e+00 : f32
    %cst_4 = arith.constant 1.000000e+00 : f32
    %5 = vector.broadcast %cst_3 : f32 to vector<16x128xf32>
    %6 = arith.maximumf %5, %4 : vector<16x128xf32>
    %7 = vector.broadcast %cst_4 : f32 to vector<16x128xf32>
    %8 = arith.minimumf %7, %6 : vector<16x128xf32>
    %c0_5 = arith.constant 0 : index
    %c0_6 = arith.constant 0 : index
    %9 = vector.load %arg3[%c0_5, %c0_6] : memref<16x128xf32, #tpu.memory_space<vmem>>, vector<16x128xf32>
    tpu.vector_store %arg3[%c0_5, %c0_6], %8 {strides = array<i32>} : memref<16x128xf32, #tpu.memory_space<vmem>>, vector<16x128xf32>,
    return
  }
  func.func @transform_0(%arg0: i32) -> (i32, i32) {
    %c0_i32 = arith.constant 0 : i32
    %c0_i32_0 = arith.constant 0 : i32
    %c0_i32_1 = arith.constant 0 : i32
    return %c0_i32, %c0_i32_0 : i32, i32
  }
  func.func @transform_1(%arg0: i32) -> (i32, i32) {
    %c0_i32 = arith.constant 0 : i32
    %c0_i32_0 = arith.constant 0 : i32
    return %arg0, %c0_i32 : i32, i32
  }
  func.func @transform_2(%arg0: i32) -> (i32, i32) {
    %c0_i32 = arith.constant 0 : i32
    %c0_i32_0 = arith.constant 0 : i32
    return %arg0, %c0_i32 : i32, i32
  }
}

</mosaic_0001>

<llo_original>
// kernel: _line_tanh_impl.1
$region0: #{_line_tanh_impl.1}
  #allocation0 [shape = 'u32[]', space=smem, size = 0x4, offset = 0x4, fixed_abs, tag = 'smem constant byte address 0x4 - core index']
  #allocation1 [shape = 'u32[144,128]{1,0:T(1,128)}', space=vmem, size = 0x12000, scoped, tag = 'internal scratch']
  #allocation2 [shape = 'f32[1,1]{1,0:T(1,128)S(6)}', space=smem, size = 0x200, scoped, tag = 'scoped memory for _line_tanh_impl.1']
  %s0 = inlined_call_operand.<no memory space> [shape: f32[1,1], index: 0, kind: input, shape index: {}]
  %s1 = inlined_call_operand.vmem [shape: f32[16,128], index: 1, kind: input, shape index: {}]
  %s2 = inlined_call_operand.vmem [shape: f32[16,128], index: 2, kind: output, shape index: {}]
  %s3 = sld [smem:[#allocation0]]
  $region18: #{_line_tanh_impl.1} parent=0
    _
  %s5 = ssub.s32 1, %s3
  %s6 = scalar_select 0, %s5, %s3
  %7 = sst [smem:[#allocation2]] %s0
  // Predicated region
  $region2: #{_line_tanh_impl.1} parent=0 // pred_check
    _
  $region3: #{_line_tanh_impl.1} parent=0 // pred_check_branch
    %9 = sbr.rel (0) target = $region5
  $region4: #{_line_tanh_impl.1} parent=0 // pred_region
    _
  $region5: #{_line_tanh_impl.1} parent=0 // pred_fallthru
    _
  // Predicated region
  $region6: #{_line_tanh_impl.1} parent=0 // pred_check
    _
  $region7: #{_line_tanh_impl.1} parent=0 // pred_check_branch
    %11 = sbr.rel (0) target = $region9
  $region8: #{_line_tanh_impl.1} parent=0 // pred_region
    _
  $region9: #{_line_tanh_impl.1} parent=0 // pred_fallthru
    _
  %s12 = sld [smem:[#allocation2]]
  %v13 = vstv %s12
  %v14 = vrcp.pop %v13
  %s15 = vtos %v14
  %v16 = vld [vmem:[%s1] sm:$0xff]
  %v17 = vld [vmem:[%s1 + $0x8] sm:$0xff]
  %v18 = vstv %s15
  %v19 = vmul.f32 %v16, %v18
  %v20 = vmul.f32 %v17, %v18
  %v21 = vmax.f32 %v19, -1.0
  %v22 = vmax.f32 %v20, -1.0
  %v23 = vmin.f32 %v21, 1.0
  %v24 = vmin.f32 %v22, 1.0
  %25 = vst [vmem:[%s2] sm:$0xff] %v23
  %26 = vst [vmem:[%s2 + $0x8] sm:$0xff] %v24
  // Predicated region
  $region10: #{_line_tanh_impl.1} parent=0 // pred_check
    _
  $region11: #{_line_tanh_impl.1} parent=0 // pred_check_branch
    %28 = sbr.rel (0) target = $region13
  $region12: #{_line_tanh_impl.1} parent=0 // pred_region
    _
  $region13: #{_line_tanh_impl.1} parent=0 // pred_fallthru
    _
  // Predicated region
  $region14: #{_line_tanh_impl.1} parent=0 // pred_check
    _
  $region15: #{_line_tanh_impl.1} parent=0 // pred_check_branch
    %30 = sbr.rel (0) target = $region17
  $region16: #{_line_tanh_impl.1} parent=0 // pred_region
    _
  $region17: #{_line_tanh_impl.1} parent=0 // pred_fallthru
    _

</llo_original>
